<compile_context>
chip_gen: v7x
topology: tpu7x:2x2x1
jax: 0.10.0
libtpu: 0.0.40
codegen_flags: <defaults>
</compile_context>

<pallas_src>
import functools

import jax
import jax.numpy as jnp
from jax.experimental import pallas as pl
from jax.experimental.pallas import tpu as pltpu

MIDDLE_DIM = 256
NEG_SLOPE = 0.01          # torch.nn.LeakyReLU default
SUBLANE = 8


def _round_up(x, m):
    return (x + m - 1) // m * m


def _leaky_relu(x):
    # max(x, a*x) == where(x >= 0, x, a*x) for 0 < a < 1; fewer VALU ops.
    return jnp.maximum(x, NEG_SLOPE * x)


# ----------------------------------------------------------------------------
# Kernel: one batch tile per grid step; all weights resident in VMEM.
# ----------------------------------------------------------------------------
def plainnet_kernel(x_ref,
                    w1_ref, b1_ref,
                    w2_ref, b2_ref,
                    w3_ref, b3_ref,
                    w4_ref, b4_ref,
                    o_ref):
    # x_ref: (TM, in_dim) f32; W*: bf16; b*: f32; o_ref: (TM, out_dim) f32.
    x_bf = x_ref[...].astype(jnp.bfloat16)

    h = jnp.dot(x_bf, w1_ref[...], preferred_element_type=jnp.float32)
    h = _leaky_relu(h + b1_ref[...])

    h = jnp.dot(h.astype(jnp.bfloat16), w2_ref[...],
                preferred_element_type=jnp.float32)
    h = _leaky_relu(h + b2_ref[...])

    h = jnp.dot(h.astype(jnp.bfloat16), w3_ref[...],
                preferred_element_type=jnp.float32)
    h = _leaky_relu(h + b3_ref[...])

    out = jnp.dot(h.astype(jnp.bfloat16), w4_ref[...],
                  preferred_element_type=jnp.float32)
    o_ref[...] = (out + b4_ref[...]).astype(o_ref.dtype)


# ----------------------------------------------------------------------------
# Parameter prep: cast matmul operands (weights) to bf16; biases stay f32.
# No feature/out-dim padding needed (full-dim blocks are legal).
# ----------------------------------------------------------------------------
def prepare_params(params):
    return {
        "W1": params["W1"].astype(jnp.bfloat16),
        "b1": params["b1"].astype(jnp.float32),
        "W2": params["W2"].astype(jnp.bfloat16),
        "b2": params["b2"].astype(jnp.float32),
        "W3": params["W3"].astype(jnp.bfloat16),
        "b3": params["b3"].astype(jnp.float32),
        "W4": params["W4"].astype(jnp.bfloat16),
        "b4": params["b4"].astype(jnp.float32),
    }


# ----------------------------------------------------------------------------
# Wrapper: adaptively batch-tiled pallas_call.
# ----------------------------------------------------------------------------
@functools.partial(jax.jit, static_argnames=("tm",))
def plainnet_forward(x, prepped, *, tm=512):
    assert tm % SUBLANE == 0, "tm must be a multiple of 8"
    B, in_dim = x.shape
    out_dim = prepped["W4"].shape[1]

    # Adaptive batch tiling:
    #  * >=2 grid steps whenever B > 8, so the 'parallel' axis shards across
    #    both v7x TensorCores,
    #  * remainder batches shrink the tile instead of padding a full extra tile.
    num_tiles = pl.cdiv(B, tm)
    if B > SUBLANE and num_tiles < 2:
        num_tiles = 2
    tile_m = _round_up(pl.cdiv(B, num_tiles), SUBLANE)
    b_pad = tile_m * num_tiles

    x_pad = x if b_pad == B else jnp.pad(x, ((0, b_pad - B), (0, 0)))

    grid = (num_tiles,)

    vmem = pltpu.MemorySpace.VMEM
    x_spec = pl.BlockSpec((tile_m, in_dim), lambda i: (i, 0), memory_space=vmem)
    out_spec = pl.BlockSpec((tile_m, out_dim), lambda i: (i, 0), memory_space=vmem)

    def const_spec(a):  # weights/biases: same full block every grid step -> VMEM resident
        return pl.BlockSpec(a.shape, lambda i: (0, 0), memory_space=vmem)

    args = (x_pad,
            prepped["W1"], prepped["b1"],
            prepped["W2"], prepped["b2"],
            prepped["W3"], prepped["b3"],
            prepped["W4"], prepped["b4"])

    flops = 2 * b_pad * (in_dim * MIDDLE_DIM
                         + 2 * MIDDLE_DIM * MIDDLE_DIM
                         + MIDDLE_DIM * out_dim)
    bytes_accessed = (b_pad * in_dim * 4                                    # x (f32)
                      + sum(prepped[f"W{i}"].size for i in range(1, 5)) * 2  # W (bf16)
                      + sum(prepped[f"b{i}"].size for i in range(1, 5)) * 4  # b (f32)
                      + b_pad * out_dim * 4)                                 # out (f32)

    out_full = pl.pallas_call(
        plainnet_kernel,
        out_shape=jax.ShapeDtypeStruct((b_pad, out_dim), jnp.float32),
        grid=grid,
        in_specs=[x_spec] + [const_spec(a) for a in args[1:]],
        out_specs=out_spec,
        compiler_params=pltpu.CompilerParams(
            dimension_semantics=("parallel",),
            vmem_limit_bytes=32 * 1024 * 1024),
        cost_estimate=pl.CostEstimate(
            flops=int(flops), transcendentals=0,
            bytes_accessed=int(bytes_accessed)),
    )(*args)

    return out_full if b_pad == B else out_full[:B]


# ----------------------------------------------------------------------------
# Init + references
# ----------------------------------------------------------------------------
def init_params(key, input_dim, output_dim, middle_dim=MIDDLE_DIM):
    """Deterministic PyTorch-style uniform init. Weights stored (in, out)."""
    dims = [(input_dim, middle_dim),
            (middle_dim, middle_dim),
            (middle_dim, middle_dim),
            (middle_dim, output_dim)]
    params = {}
    for i, (fan_in, fan_out) in enumerate(dims, start=1):
        key, kw, kb = jax.random.split(key, 3)
        bound = 1.0 / jnp.sqrt(fan_in)
        params[f"W{i}"] = jax.random.uniform(
            kw, (fan_in, fan_out), jnp.float32, -bound, bound)
        params[f"b{i}"] = jax.random.uniform(
            kb, (1, fan_out), jnp.float32, -bound, bound)
    return params


def plainnet_reference_f32(x, params):
    """Pure-f32 reference (PyTorch semantics)."""
    h = x
    for i in range(1, 4):
        h = _leaky_relu(jnp.dot(h, params[f"W{i}"],
                                precision=jax.lax.Precision.HIGHEST)
                        + params[f"b{i}"])
    return jnp.dot(h, params["W4"],
                   precision=jax.lax.Precision.HIGHEST) + params["b4"]


def plainnet_reference_bf16(x, params):
    """Emulates the kernel's bf16-operand / f32-accumulate arithmetic."""
    bf = lambda a: a.astype(jnp.bfloat16).astype(jnp.float32)
    h = bf(x)
    for i in range(1, 4):
        h = _leaky_relu(jnp.dot(h, bf(params[f"W{i}"]),
                                precision=jax.lax.Precision.HIGHEST)
                        + params[f"b{i}"])
        h = bf(h)
    return jnp.dot(h, bf(params["W4"]),
                   precision=jax.lax.Precision.HIGHEST) + params["b4"]


if __name__ == "__main__":
    key = jax.random.PRNGKey(0)
    k_x, k_p, k_x2 = jax.random.split(key, 3)

    input_dim, output_dim = 32, 16
    params = init_params(k_p, input_dim, output_dim)
    prepped = prepare_params(params)

    # Small batch (single grid step, tile_m = 8).
    batch = 8
    x_small = jax.random.normal(k_x, (batch, input_dim), jnp.float32)
    out_small = jax.block_until_ready(plainnet_forward(x_small, prepped))
    assert out_small.shape == (batch, output_dim)

    ref_bf16 = plainnet_reference_bf16(x_small, params)
    ref_f32 = plainnet_reference_f32(x_small, params)
    assert jnp.allclose(out_small, ref_bf16, atol=1e-3, rtol=1e-3), "bf16-path mismatch"
    assert jnp.allclose(out_small, ref_f32, atol=5e-2, rtol=5e-2), "f32 semantics mismatch"

    # Remainder batch exercising the adaptive >=2-step 'parallel' grid
    # (B=300 -> 2 tiles of 152 rows, not a full 512-row pad).
    x_big = jax.random.normal(k_x2, (300, input_dim), jnp.float32)
    out_big = jax.block_until_ready(plainnet_forward(x_big, prepped, tm=512))
    assert out_big.shape == (300, output_dim)
    assert jnp.allclose(out_big, plainnet_reference_bf16(x_big, params),
                        atol=1e-3, rtol=1e-3), "gridded bf16-path mismatch"
    assert jnp.allclose(out_big, plainnet_reference_f32(x_big, params),
                        atol=5e-2, rtol=5e-2), "gridded f32 semantics mismatch"

    print("KERNEL_OK")
</pallas_src>

<mosaic_0001>
module attributes {stable_mosaic.version = 11 : i64} {
  func.func @plainnet_kernel(%arg0: i32, %arg1: memref<8x32xf32, #tpu.memory_space<vmem>>, %arg2: memref<32x256xbf16, #tpu.memory_space<vmem>>, %arg3: memref<1x256xf32, #tpu.memory_space<vmem>>, %arg4: memref<256x256xbf16, #tpu.memory_space<vmem>>, %arg5: memref<1x256xf32, #tpu.memory_space<vmem>>, %arg6: memref<256x256xbf16, #tpu.memory_space<vmem>>, %arg7: memref<1x256xf32, #tpu.memory_space<vmem>>, %arg8: memref<256x16xbf16, #tpu.memory_space<vmem>>, %arg9: memref<1x16xf32, #tpu.memory_space<vmem>>, %arg10: memref<8x16xf32, #tpu.memory_space<vmem>>) attributes {dimension_semantics = [#tpu.dimension_semantics<parallel>], iteration_bounds = array<i64: 1>, scalar_prefetch = 0 : i64, scratch_operands = 0 : i64, tpu.core_type = #tpu.core_type<tc>, window_params = [{transform_indices = @transform_0, window_bounds = array<i64: 8, 32>}, {pipeline_mode = #tpu.pipeline_mode<synchronous>, transform_indices = @transform_1, window_bounds = array<i64: 32, 256>}, {pipeline_mode = #tpu.pipeline_mode<synchronous>, transform_indices = @transform_2, window_bounds = array<i64: 1, 256>}, {pipeline_mode = #tpu.pipeline_mode<synchronous>, transform_indices = @transform_3, window_bounds = array<i64: 256, 256>}, {pipeline_mode = #tpu.pipeline_mode<synchronous>, transform_indices = @transform_4, window_bounds = array<i64: 1, 256>}, {pipeline_mode = #tpu.pipeline_mode<synchronous>, transform_indices = @transform_5, window_bounds = array<i64: 256, 256>}, {pipeline_mode = #tpu.pipeline_mode<synchronous>, transform_indices = @transform_6, window_bounds = array<i64: 1, 256>}, {pipeline_mode = #tpu.pipeline_mode<synchronous>, transform_indices = @transform_7, window_bounds = array<i64: 256, 16>}, {pipeline_mode = #tpu.pipeline_mode<synchronous>, transform_indices = @transform_8, window_bounds = array<i64: 1, 16>}, {transform_indices = @transform_9, window_bounds = array<i64: 8, 16>}]} {
    %c0 = arith.constant 0 : index
    %c0_0 = arith.constant 0 : index
    %0 = vector.load %arg1[%c0, %c0_0] : memref<8x32xf32, #tpu.memory_space<vmem>>, vector<8x32xf32>
    %1 = arith.truncf %0 : vector<8x32xf32> to vector<8x32xbf16>
    %c0_1 = arith.constant 0 : index
    %c0_2 = arith.constant 0 : index
    %2 = vector.load %arg2[%c0_1, %c0_2] : memref<32x256xbf16, #tpu.memory_space<vmem>>, vector<32x256xbf16>
    %cst = arith.constant dense<0.000000e+00> : vector<8x256xf32>
    %3 = tpu.matmul %1, %2, %cst {dimension_numbers = #tpu.dot_dimension_numbers<[1], [0], [0], [1], [0, 0, 1, 1], [], []>} : vector<8x32xbf16>, vector<32x256xbf16>, vector<8x256xf32> -> vector<8x256xf32>
    %c0_3 = arith.constant 0 : index
    %c0_4 = arith.constant 0 : index
    %4 = vector.load %arg3[%c0_3, %c0_4] : memref<1x256xf32, #tpu.memory_space<vmem>>, vector<1x256xf32>
    %5 = vector.broadcast %4 : vector<1x256xf32> to vector<8x256xf32>
    %6 = arith.addf %3, %5 : vector<8x256xf32>
    %cst_5 = arith.constant 0.00999999977 : f32
    %7 = vector.broadcast %cst_5 : f32 to vector<8x256xf32>
    %8 = arith.mulf %7, %6 : vector<8x256xf32>
    %9 = arith.maximumf %6, %8 : vector<8x256xf32>
    %10 = arith.truncf %9 : vector<8x256xf32> to vector<8x256xbf16>
    %c0_6 = arith.constant 0 : index
    %c0_7 = arith.constant 0 : index
    %11 = vector.load %arg4[%c0_6, %c0_7] : memref<256x256xbf16, #tpu.memory_space<vmem>>, vector<256x256xbf16>
    %cst_8 = arith.constant dense<0.000000e+00> : vector<8x256xf32>
    %12 = tpu.matmul %10, %11, %cst_8 {dimension_numbers = #tpu.dot_dimension_numbers<[1], [0], [0], [1], [0, 0, 1, 1], [], []>} : vector<8x256xbf16>, vector<256x256xbf16>, vector<8x256xf32> -> vector<8x256xf32>
    %c0_9 = arith.constant 0 : index
    %c0_10 = arith.constant 0 : index
    %13 = vector.load %arg5[%c0_9, %c0_10] : memref<1x256xf32, #tpu.memory_space<vmem>>, vector<1x256xf32>
    %14 = vector.broadcast %13 : vector<1x256xf32> to vector<8x256xf32>
    %15 = arith.addf %12, %14 : vector<8x256xf32>
    %cst_11 = arith.constant 0.00999999977 : f32
    %16 = vector.broadcast %cst_11 : f32 to vector<8x256xf32>
    %17 = arith.mulf %16, %15 : vector<8x256xf32>
    %18 = arith.maximumf %15, %17 : vector<8x256xf32>
    %19 = arith.truncf %18 : vector<8x256xf32> to vector<8x256xbf16>
    %c0_12 = arith.constant 0 : index
    %c0_13 = arith.constant 0 : index
    %20 = vector.load %arg6[%c0_12, %c0_13] : memref<256x256xbf16, #tpu.memory_space<vmem>>, vector<256x256xbf16>
    %cst_14 = arith.constant dense<0.000000e+00> : vector<8x256xf32>
    %21 = tpu.matmul %19, %20, %cst_14 {dimension_numbers = #tpu.dot_dimension_numbers<[1], [0], [0], [1], [0, 0, 1, 1], [], []>} : vector<8x256xbf16>, vector<256x256xbf16>, vector<8x256xf32> -> vector<8x256xf32>
    %c0_15 = arith.constant 0 : index
    %c0_16 = arith.constant 0 : index
    %22 = vector.load %arg7[%c0_15, %c0_16] : memref<1x256xf32, #tpu.memory_space<vmem>>, vector<1x256xf32>
    %23 = vector.broadcast %22 : vector<1x256xf32> to vector<8x256xf32>
    %24 = arith.addf %21, %23 : vector<8x256xf32>
    %cst_17 = arith.constant 0.00999999977 : f32
    %25 = vector.broadcast %cst_17 : f32 to vector<8x256xf32>
    %26 = arith.mulf %25, %24 : vector<8x256xf32>
    %27 = arith.maximumf %24, %26 : vector<8x256xf32>
    %28 = arith.truncf %27 : vector<8x256xf32> to vector<8x256xbf16>
    %c0_18 = arith.constant 0 : index
    %c0_19 = arith.constant 0 : index
    %29 = vector.load %arg8[%c0_18, %c0_19] : memref<256x16xbf16, #tpu.memory_space<vmem>>, vector<256x16xbf16>
    %cst_20 = arith.constant dense<0.000000e+00> : vector<8x16xf32>
    %30 = tpu.matmul %28, %29, %cst_20 {dimension_numbers = #tpu.dot_dimension_numbers<[1], [0], [0], [1], [0, 0, 1, 1], [], []>} : vector<8x256xbf16>, vector<256x16xbf16>, vector<8x16xf32> -> vector<8x16xf32>
    %c0_21 = arith.constant 0 : index
    %c0_22 = arith.constant 0 : index
    %31 = vector.load %arg9[%c0_21, %c0_22] : memref<1x16xf32, #tpu.memory_space<vmem>>, vector<1x16xf32>
    %32 = vector.broadcast %31 : vector<1x16xf32> to vector<8x16xf32>
    %33 = arith.addf %30, %32 : vector<8x16xf32>
    %c0_23 = arith.constant 0 : index
    %c0_24 = arith.constant 0 : index
    %34 = vector.load %arg10[%c0_23, %c0_24] : memref<8x16xf32, #tpu.memory_space<vmem>>, vector<8x16xf32>
    tpu.vector_store %arg10[%c0_23, %c0_24], %33 {strides = array<i32>} : memref<8x16xf32, #tpu.memory_space<vmem>>, vector<8x16xf32>,
    return
  }
  func.func @transform_0(%arg0: i32) -> (i32, i32) {
    %c0_i32 = arith.constant 0 : i32
    %c0_i32_0 = arith.constant 0 : i32
    return %arg0, %c0_i32 : i32, i32
  }
  func.func @transform_1(%arg0: i32) -> (i32, i32) {
    %c0_i32 = arith.constant 0 : i32
    %c0_i32_0 = arith.constant 0 : i32
    %c0_i32_1 = arith.constant 0 : i32
    return %c0_i32, %c0_i32_0 : i32, i32
  }
  func.func @transform_2(%arg0: i32) -> (i32, i32) {
    %c0_i32 = arith.constant 0 : i32
    %c0_i32_0 = arith.constant 0 : i32
    %c0_i32_1 = arith.constant 0 : i32
    return %c0_i32, %c0_i32_0 : i32, i32
  }
  func.func @transform_3(%arg0: i32) -> (i32, i32) {
    %c0_i32 = arith.constant 0 : i32
    %c0_i32_0 = arith.constant 0 : i32
    %c0_i32_1 = arith.constant 0 : i32
    return %c0_i32, %c0_i32_0 : i32, i32
  }
  func.func @transform_4(%arg0: i32) -> (i32, i32) {
    %c0_i32 = arith.constant 0 : i32
    %c0_i32_0 = arith.constant 0 : i32
    %c0_i32_1 = arith.constant 0 : i32
    return %c0_i32, %c0_i32_0 : i32, i32
  }
  func.func @transform_5(%arg0: i32) -> (i32, i32) {
    %c0_i32 = arith.constant 0 : i32
    %c0_i32_0 = arith.constant 0 : i32
    %c0_i32_1 = arith.constant 0 : i32
    return %c0_i32, %c0_i32_0 : i32, i32
  }
  func.func @transform_6(%arg0: i32) -> (i32, i32) {
    %c0_i32 = arith.constant 0 : i32
    %c0_i32_0 = arith.constant 0 : i32
    %c0_i32_1 = arith.constant 0 : i32
    return %c0_i32, %c0_i32_0 : i32, i32
  }
  func.func @transform_7(%arg0: i32) -> (i32, i32) {
    %c0_i32 = arith.constant 0 : i32
    %c0_i32_0 = arith.constant 0 : i32
    %c0_i32_1 = arith.constant 0 : i32
    return %c0_i32, %c0_i32_0 : i32, i32
  }
  func.func @transform_8(%arg0: i32) -> (i32, i32) {
    %c0_i32 = arith.constant 0 : i32
    %c0_i32_0 = arith.constant 0 : i32
    %c0_i32_1 = arith.constant 0 : i32
    return %c0_i32, %c0_i32_0 : i32, i32
  }
  func.func @transform_9(%arg0: i32) -> (i32, i32) {
    %c0_i32 = arith.constant 0 : i32
    %c0_i32_0 = arith.constant 0 : i32
    return %arg0, %c0_i32 : i32, i32
  }
}

</mosaic_0001>

<llo_original>
// kernel: plainnet_forward.1
$region0: #{plainnet_forward.1}
  #allocation0 [shape = 'u32[]', space=smem, size = 0x4, offset = 0x4, fixed_abs, tag = 'smem constant byte address 0x4 - core index']
  #allocation1 [shape = 'u32[144,128]{1,0:T(1,128)}', space=vmem, size = 0x12000, scoped, tag = 'internal scratch']
  %s0 = inlined_call_operand.vmem [shape: f32[8,32], index: 0, kind: input, shape index: {}]
  %s1 = inlined_call_operand.vmem [shape: bf16[32,256], index: 1, kind: input, shape index: {}]
  %s2 = inlined_call_operand.vmem [shape: f32[1,256], index: 2, kind: input, shape index: {}]
  %s3 = inlined_call_operand.hbm [shape: bf16[256,256], index: 3, kind: input, shape index: {}]
  %s4 = inlined_call_operand.vmem [shape: f32[1,256], index: 4, kind: input, shape index: {}]
  %s5 = inlined_call_operand.hbm [shape: bf16[256,256], index: 5, kind: input, shape index: {}]
  %s6 = inlined_call_operand.vmem [shape: f32[1,256], index: 6, kind: input, shape index: {}]
  %s7 = inlined_call_operand.vmem [shape: bf16[256,16], index: 7, kind: input, shape index: {}]
  %s8 = inlined_call_operand.vmem [shape: f32[1,16], index: 8, kind: input, shape index: {}]
  %s9 = inlined_call_operand.hbm [shape: f32[8,16], index: 9, kind: output, shape index: {}]
  %s10 = sld [smem:[#allocation0]]
  $region54: #{plainnet_forward.1} parent=0
    _
  %s12 = ssub.s32 1, %s10
  %s13 = scalar_select 0, %s12, %s10
  $region1: #{plainnet_forward.1} parent=0
    #allocation2 [shape = 'u8[131072]{0}', space=vmem, size = 0x20000, scoped, tag = 'input window, operand 3, single buffered']
    #allocation3 [shape = 's32[1]{0}', space=sflag, size = 0x4, scoped, tag = 'scoped memory for plainnet_forward.1']
    #allocation4 [shape = 's32[1]{0}', space=sflag, size = 0x4, scoped, tag = 'scoped memory for plainnet_forward.1']
    #allocation5 [shape = 'u8[131072]{0}', space=vmem, size = 0x20000, scoped, tag = 'input window, operand 5, single buffered']
    #allocation6 [shape = 's32[1]{0}', space=sflag, size = 0x4, scoped, tag = 'scoped memory for plainnet_forward.1']
    #allocation7 [shape = 'u8[4096]{0}', space=vmem, size = 0x1000, scoped, tag = 'output window, operand 0, single buffered']
    %14 = vsyncpa [#allocation3], 0
    %15 = vsyncpa [#allocation6], 0
    %16 = vsyncpa [#allocation4], 0
    // Predicated region
    $region2: #{plainnet_forward.1} parent=1 // pred_check
      _
    $region3: #{plainnet_forward.1} parent=1 // pred_check_branch
      %18 = sbr.rel (0) target = $region5
    $region4: #{plainnet_forward.1} parent=1 // pred_region
      _
    $region5: #{plainnet_forward.1} parent=1 // pred_fallthru
      _
    // Predicated region
    $region6: #{plainnet_forward.1} parent=1 // pred_check
      _
    $region7: #{plainnet_forward.1} parent=1 // pred_check_branch
      %20 = sbr.rel (0) target = $region9
    $region8: #{plainnet_forward.1} parent=1 // pred_region
      _
    $region9: #{plainnet_forward.1} parent=1 // pred_fallthru
      _
    // Predicated region
    $region10: #{plainnet_forward.1} parent=1 // pred_check
      _
    $region11: #{plainnet_forward.1} parent=1 // pred_check_branch
      %22 = sbr.rel (0) target = $region13
    $region12: #{plainnet_forward.1} parent=1 // pred_region
      _
    $region13: #{plainnet_forward.1} parent=1 // pred_fallthru
      _
    // Predicated region
    $region14: #{plainnet_forward.1} parent=1 // pred_check
      _
    $region15: #{plainnet_forward.1} parent=1 // pred_check_branch
      %24 = sbr.rel (0) target = $region17
    $region16: #{plainnet_forward.1} parent=1 // pred_region
      %s26 = ssub.s32 4096, 4096
      %27 = vsyncadd [#allocation3], %s26
      %s28 = sshll.u32 [#allocation2], 4
      %s29 = int_to_ptr.vmem [resolvable:$true] %s28
      %34 = dma.hbm_to_vmem [thread:$0]  %s3, 4096, %s29, [#allocation3], 128, 128, 8
    $region17: #{plainnet_forward.1} parent=1 // pred_fallthru
      _
    // Predicated region
    $region18: #{plainnet_forward.1} parent=1 // pred_check
      _
    $region19: #{plainnet_forward.1} parent=1 // pred_check_branch
      %36 = sbr.rel (0) target = $region21
    $region20: #{plainnet_forward.1} parent=1 // pred_region
      _
    $region21: #{plainnet_forward.1} parent=1 // pred_fallthru
      _
    // Predicated region
    $region22: #{plainnet_forward.1} parent=1 // pred_check
      _
    $region23: #{plainnet_forward.1} parent=1 // pred_check_branch
      %38 = sbr.rel (0) target = $region25
    $region24: #{plainnet_forward.1} parent=1 // pred_region
      %s40 = ssub.s32 4096, 4096
      %41 = vsyncadd [#allocation6], %s40
      %s42 = sshll.u32 [#allocation5], 4
      %s43 = int_to_ptr.vmem [resolvable:$true] %s42
      %48 = dma.hbm_to_vmem [thread:$0]  %s5, 4096, %s43, [#allocation6], 128, 128, 8
    $region25: #{plainnet_forward.1} parent=1 // pred_fallthru
      _
    // Predicated region
    $region26: #{plainnet_forward.1} parent=1 // pred_check
      _
    $region27: #{plainnet_forward.1} parent=1 // pred_check_branch
      %50 = sbr.rel (0) target = $region29
    $region28: #{plainnet_forward.1} parent=1 // pred_region
      _
    $region29: #{plainnet_forward.1} parent=1 // pred_fallthru
      _
    // Predicated region
    $region30: #{plainnet_forward.1} parent=1 // pred_check
      _
    $region31: #{plainnet_forward.1} parent=1 // pred_check_branch
      %52 = sbr.rel (0) target = $region33
    $region32: #{plainnet_forward.1} parent=1 // pred_region
      _
    $region33: #{plainnet_forward.1} parent=1 // pred_fallthru
      _
    // Predicated region
    $region34: #{plainnet_forward.1} parent=1 // pred_check
      _
    $region35: #{plainnet_forward.1} parent=1 // pred_check_branch
      %54 = sbr.rel (0) target = $region37
    $region36: #{plainnet_forward.1} parent=1 // pred_region
      _
    $region37: #{plainnet_forward.1} parent=1 // pred_fallthru
      _
    // Predicated region
    $region38: #{plainnet_forward.1} parent=1 // pred_check
      _
    $region39: #{plainnet_forward.1} parent=1 // pred_check_branch
      %56 = sbr.rel (0) target = $region41
    $region40: #{plainnet_forward.1} parent=1 // pred_region
      %57 = dma.done [#allocation3], 4096
    $region41: #{plainnet_forward.1} parent=1 // pred_fallthru
      _
    // Predicated region
    $region42: #{plainnet_forward.1} parent=1 // pred_check
      _
    $region43: #{plainnet_forward.1} parent=1 // pred_check_branch
      %59 = sbr.rel (0) target = $region45
    $region44: #{plainnet_forward.1} parent=1 // pred_region
      %60 = dma.done [#allocation6], 4096
    $region45: #{plainnet_forward.1} parent=1 // pred_fallthru
      _
    %v62 = vld [vmem:[%s0] sm:$0xff]
    %v63 = vpack.c.bf16 %v62, %v62
    %v64 = vld [vmem:[%s1] sm:$0xff]
    %v65 = vld [vmem:[%s1 + $0x8] sm:$0xff]
    %v66 = vld [vmem:[%s1 + $0x10] sm:$0xff]
    %v67 = vld [vmem:[%s1 + $0x18] sm:$0xff]
    %v68 = vld [vmem:[%s2] sm:$0x3]
    %v70 = vlaneseq
    %v71 = vshrl.u32 %v70, 7
    %v72 = vsub.s32 0, %v71
    %v73 = vrot.slane %v68, %v72
    %v74 = vlaneseq
    %v75 = vshrl.u32 %v74, 7
    %v76 = vsub.s32 1, %v75
    %v77 = vrot.slane %v68, %v76
    %v84 = vunpack.c.l.b16 %v64
    %v85 = vunpack.c.h.b16 %v64
    %v86 = vunpack.c.l.b16 %v65
    %v87 = vunpack.c.h.b16 %v65
    %v88 = vunpack.c.l.b16 %v66
    %v89 = vunpack.c.h.b16 %v66
    %v90 = vunpack.c.l.b16 %v67
    %v91 = vunpack.c.h.b16 %v67
    %v92 = vpack.c.b16 %v86, %v84
    %v93 = vpack.c.b16 %v87, %v85
    %v94 = vpack.c.b16 %v90, %v88
    %v95 = vpack.c.b16 %v91, %v89
    %vm100 = vcmask 261120
    %v102 = vsel %vm100, %v63, 0
    %104 = vmatprep.subr.bf16.mxu0 %v93
    %105 = vmatpush1.bf16.msra.mxu0 %v92
    %106 = vmatprep.subr.bf16.mxu0 %v95
    %107 = vmatpush1.bf16.msra.mxu0 %v94
    %108 = vmatprep.subr.bf16.mxu0 0
    %109 = vmatpush1.bf16.msra.mxu0 0
    %110 = vmatprep.subr.bf16.mxu0 0
    %111 = vmatpush1.bf16.msra.mxu0 0
    %112 = vmatprep.subr.bf16.mxu0 0
    %113 = vmatpush1.bf16.msra.mxu0 0
    %114 = vmatprep.subr.bf16.mxu0 0
    %115 = vmatpush1.bf16.msra.mxu0 0
    %116 = vmatprep.subr.bf16.mxu0 0
    %117 = vmatpush1.bf16.msra.mxu0 0
    %118 = vmatprep.subr.bf16.mxu0 0
    %119 = vmatpush1.bf16.msra.mxu0 0
    %120 = vmatprep.subr.bf16.mxu0 0
    %121 = vmatpush1.bf16.msra.mxu0 0
    %122 = vmatprep.subr.bf16.mxu0 0
    %123 = vmatpush1.bf16.msra.mxu0 0
    %124 = vmatprep.subr.bf16.mxu0 0
    %125 = vmatpush1.bf16.msra.mxu0 0
    %126 = vmatprep.subr.bf16.mxu0 0
    %127 = vmatpush1.bf16.msra.mxu0 0
    %128 = vmatprep.subr.bf16.mxu0 0
    %129 = vmatpush1.bf16.msra.mxu0 0
    %130 = vmatprep.subr.bf16.mxu0 0
    %131 = vmatpush1.bf16.msra.mxu0 0
    %132 = vmatprep.subr.bf16.mxu0 0
    %133 = vmatpush1.bf16.msra.mxu0 0
    %134 = vmatprep.subr.bf16.mxu0 0
    %135 = vmatpush1.bf16.msra.mxu0 0
    %136 = vmatprep.mubr.bf16.mxu0 0
    %137 = vmatmul.mubr.bf16.gmra.mrb[0].mxu0 %v102
    %v138 = vpop.f32.mrb[0].mxu0
    %v139 = vadd.f32 %v73, %v138
    %v140 = vpop.f32.mrb[0].mxu0
    %v141 = vadd.f32 %v77, %v140
    %v142 = vpop.f32.mrb[0].mxu0
    %v143 = vpop.f32.mrb[0].mxu0
    %144 = vdwg.mxu0
    %v145 = vmul.f32 %v139, 0.01
    %v146 = vmul.f32 %v141, 0.01
    %v147 = vmax.f32 %v139, %v145
    %v148 = vmax.f32 %v141, %v146
    %v149 = vpack.c.bf16 %v147, %v147
    %v150 = vpack.c.bf16 %v148, %v148
    %v151 = vld [vmem:[#allocation2] sm:$0xff]
    %v152 = vld [vmem:[#allocation2 + $0x8] sm:$0xff]
    %v153 = vld [vmem:[#allocation2 + $0x10] sm:$0xff]
    %v154 = vld [vmem:[#allocation2 + $0x18] sm:$0xff]
    %v155 = vld [vmem:[#allocation2 + $0x20] sm:$0xff]
    %v156 = vld [vmem:[#allocation2 + $0x28] sm:$0xff]
    %v157 = vld [vmem:[#allocation2 + $0x30] sm:$0xff]
    %v158 = vld [vmem:[#allocation2 + $0x38] sm:$0xff]
    %v159 = vld [vmem:[#allocation2 + $0x40] sm:$0xff]
    %v160 = vld [vmem:[#allocation2 + $0x48] sm:$0xff]
    %v161 = vld [vmem:[#allocation2 + $0x50] sm:$0xff]
    %v162 = vld [vmem:[#allocation2 + $0x58] sm:$0xff]
    %v163 = vld [vmem:[#allocation2 + $0x60] sm:$0xff]
    %v164 = vld [vmem:[#allocation2 + $0x68] sm:$0xff]
    %v165 = vld [vmem:[#allocation2 + $0x70] sm:$0xff]
    %v166 = vld [vmem:[#allocation2 + $0x78] sm:$0xff]
    %v167 = vld [vmem:[#allocation2 + $0x80] sm:$0xff]
    %v168 = vld [vmem:[#allocation2 + $0x88] sm:$0xff]
    %v169 = vld [vmem:[#allocation2 + $0x90] sm:$0xff]
    %v170 = vld [vmem:[#allocation2 + $0x98] sm:$0xff]
    %v171 = vld [vmem:[#allocation2 + $0xa0] sm:$0xff]
    %v172 = vld [vmem:[#allocation2 + $0xa8] sm:$0xff]
    %v173 = vld [vmem:[#allocation2 + $0xb0] sm:$0xff]
    %v174 = vld [vmem:[#allocation2 + $0xb8] sm:$0xff]
    %v175 = vld [vmem:[#allocation2 + $0xc0] sm:$0xff]
    %v176 = vld [vmem:[#allocation2 + $0xc8] sm:$0xff]
    %v177 = vld [vmem:[#allocation2 + $0xd0] sm:$0xff]
    %v178 = vld [vmem:[#allocation2 + $0xd8] sm:$0xff]
    %v179 = vld [vmem:[#allocation2 + $0xe0] sm:$0xff]
    %v180 = vld [vmem:[#allocation2 + $0xe8] sm:$0xff]
    %v181 = vld [vmem:[#allocation2 + $0xf0] sm:$0xff]
    %v182 = vld [vmem:[#allocation2 + $0xf8] sm:$0xff]
    %v183 = vld [vmem:[%s4] sm:$0x3]
    %v185 = vlaneseq
    %v186 = vshrl.u32 %v185, 7
    %v187 = vsub.s32 0, %v186
    %v188 = vrot.slane %v183, %v187
    %v189 = vlaneseq
    %v190 = vshrl.u32 %v189, 7
    %v191 = vsub.s32 1, %v190
    %v192 = vrot.slane %v183, %v191
    %v227 = vunpack.c.l.b16 %v151
    %v228 = vunpack.c.h.b16 %v151
    %v229 = vunpack.c.l.b16 %v152
    %v230 = vunpack.c.h.b16 %v152
    %v231 = vunpack.c.l.b16 %v153
    %v232 = vunpack.c.h.b16 %v153
    %v233 = vunpack.c.l.b16 %v154
    %v234 = vunpack.c.h.b16 %v154
    %v235 = vunpack.c.l.b16 %v155
    %v236 = vunpack.c.h.b16 %v155
    %v237 = vunpack.c.l.b16 %v156
    %v238 = vunpack.c.h.b16 %v156
    %v239 = vunpack.c.l.b16 %v157
    %v240 = vunpack.c.h.b16 %v157
    %v241 = vunpack.c.l.b16 %v158
    %v242 = vunpack.c.h.b16 %v158
    %v243 = vunpack.c.l.b16 %v159
    %v244 = vunpack.c.h.b16 %v159
    %v245 = vunpack.c.l.b16 %v160
    %v246 = vunpack.c.h.b16 %v160
    %v247 = vunpack.c.l.b16 %v161
    %v248 = vunpack.c.h.b16 %v161
    %v249 = vunpack.c.l.b16 %v162
    %v250 = vunpack.c.h.b16 %v162
    %v251 = vunpack.c.l.b16 %v163
    %v252 = vunpack.c.h.b16 %v163
    %v253 = vunpack.c.l.b16 %v164
    %v254 = vunpack.c.h.b16 %v164
    %v255 = vunpack.c.l.b16 %v165
    %v256 = vunpack.c.h.b16 %v165
    %v257 = vunpack.c.l.b16 %v166
    %v258 = vunpack.c.h.b16 %v166
    %v259 = vunpack.c.l.b16 %v167
    %v260 = vunpack.c.h.b16 %v167
    %v261 = vunpack.c.l.b16 %v168
    %v262 = vunpack.c.h.b16 %v168
    %v263 = vunpack.c.l.b16 %v169
    %v264 = vunpack.c.h.b16 %v169
    %v265 = vunpack.c.l.b16 %v170
    %v266 = vunpack.c.h.b16 %v170
    %v267 = vunpack.c.l.b16 %v171
    %v268 = vunpack.c.h.b16 %v171
    %v269 = vunpack.c.l.b16 %v172
    %v270 = vunpack.c.h.b16 %v172
    %v271 = vunpack.c.l.b16 %v173
    %v272 = vunpack.c.h.b16 %v173
    %v273 = vunpack.c.l.b16 %v174
    %v274 = vunpack.c.h.b16 %v174
    %v275 = vunpack.c.l.b16 %v175
    %v276 = vunpack.c.h.b16 %v175
    %v277 = vunpack.c.l.b16 %v176
    %v278 = vunpack.c.h.b16 %v176
    %v279 = vunpack.c.l.b16 %v177
    %v280 = vunpack.c.h.b16 %v177
    %v281 = vunpack.c.l.b16 %v178
    %v282 = vunpack.c.h.b16 %v178
    %v283 = vunpack.c.l.b16 %v179
    %v284 = vunpack.c.h.b16 %v179
    %v285 = vunpack.c.l.b16 %v180
    %v286 = vunpack.c.h.b16 %v180
    %v287 = vunpack.c.l.b16 %v181
    %v288 = vunpack.c.h.b16 %v181
    %v289 = vunpack.c.l.b16 %v182
    %v290 = vunpack.c.h.b16 %v182
    %v291 = vpack.c.b16 %v229, %v227
    %v292 = vpack.c.b16 %v230, %v228
    %v293 = vpack.c.b16 %v233, %v231
    %v294 = vpack.c.b16 %v234, %v232
    %v295 = vpack.c.b16 %v237, %v235
    %v296 = vpack.c.b16 %v238, %v236
    %v297 = vpack.c.b16 %v241, %v239
    %v298 = vpack.c.b16 %v242, %v240
    %v299 = vpack.c.b16 %v245, %v243
    %v300 = vpack.c.b16 %v246, %v244
    %v301 = vpack.c.b16 %v249, %v247
    %v302 = vpack.c.b16 %v250, %v248
    %v303 = vpack.c.b16 %v253, %v251
    %v304 = vpack.c.b16 %v254, %v252
    %v305 = vpack.c.b16 %v257, %v255
    %v306 = vpack.c.b16 %v258, %v256
    %v307 = vpack.c.b16 %v261, %v259
    %v308 = vpack.c.b16 %v262, %v260
    %v309 = vpack.c.b16 %v265, %v263
    %v310 = vpack.c.b16 %v266, %v264
    %v311 = vpack.c.b16 %v269, %v267
    %v312 = vpack.c.b16 %v270, %v268
    %v313 = vpack.c.b16 %v273, %v271
    %v314 = vpack.c.b16 %v274, %v272
    %v315 = vpack.c.b16 %v277, %v275
    %v316 = vpack.c.b16 %v278, %v276
    %v317 = vpack.c.b16 %v281, %v279
    %v318 = vpack.c.b16 %v282, %v280
    %v319 = vpack.c.b16 %v285, %v283
    %v320 = vpack.c.b16 %v286, %v284
    %v321 = vpack.c.b16 %v289, %v287
    %v322 = vpack.c.b16 %v290, %v288
    %355 = vmatprep.subr.bf16.mxu0 %v292
    %356 = vmatpush1.bf16.msra.mxu0 %v291
    %357 = vmatprep.subr.bf16.mxu0 %v294
    %358 = vmatpush1.bf16.msra.mxu0 %v293
    %359 = vmatprep.subr.bf16.mxu0 %v296
    %360 = vmatpush1.bf16.msra.mxu0 %v295
    %361 = vmatprep.subr.bf16.mxu0 %v298
    %362 = vmatpush1.bf16.msra.mxu0 %v297
    %363 = vmatprep.subr.bf16.mxu0 %v300
    %364 = vmatpush1.bf16.msra.mxu0 %v299
    %365 = vmatprep.subr.bf16.mxu0 %v302
    %366 = vmatpush1.bf16.msra.mxu0 %v301
    %367 = vmatprep.subr.bf16.mxu0 %v304
    %368 = vmatpush1.bf16.msra.mxu0 %v303
    %369 = vmatprep.subr.bf16.mxu0 %v306
    %370 = vmatpush1.bf16.msra.mxu0 %v305
    %371 = vmatprep.subr.bf16.mxu0 %v308
    %372 = vmatpush1.bf16.msra.mxu0 %v307
    %373 = vmatprep.subr.bf16.mxu0 %v310
    %374 = vmatpush1.bf16.msra.mxu0 %v309
    %375 = vmatprep.subr.bf16.mxu0 %v312
    %376 = vmatpush1.bf16.msra.mxu0 %v311
    %377 = vmatprep.subr.bf16.mxu0 %v314
    %378 = vmatpush1.bf16.msra.mxu0 %v313
    %379 = vmatprep.subr.bf16.mxu0 %v316
    %380 = vmatpush1.bf16.msra.mxu0 %v315
    %381 = vmatprep.subr.bf16.mxu0 %v318
    %382 = vmatpush1.bf16.msra.mxu0 %v317
    %383 = vmatprep.subr.bf16.mxu0 %v320
    %384 = vmatpush1.bf16.msra.mxu0 %v319
    %385 = vmatprep.subr.bf16.mxu0 %v322
    %386 = vmatpush1.bf16.msra.mxu0 %v321
    %387 = vmatprep.mubr.bf16.mxu0 %v150
    %388 = vmatmul.mubr.bf16.gmra.mrb[0].mxu0 %v149
    %v389 = vpop.f32.mrb[0].mxu0
    %v390 = vadd.f32 %v188, %v389
    %v391 = vpop.f32.mrb[0].mxu0
    %v392 = vadd.f32 %v192, %v391
    %v393 = vpop.f32.mrb[0].mxu0
    %v394 = vpop.f32.mrb[0].mxu0
    %395 = vdwg.mxu0
    %v396 = vmul.f32 %v390, 0.01
    %v397 = vmul.f32 %v392, 0.01
    %v398 = vmax.f32 %v390, %v396
    %v399 = vmax.f32 %v392, %v397
    %v400 = vpack.c.bf16 %v398, %v398
    %v401 = vpack.c.bf16 %v399, %v399
    %v402 = vld [vmem:[#allocation5] sm:$0xff]
    %v403 = vld [vmem:[#allocation5 + $0x8] sm:$0xff]
    %v404 = vld [vmem:[#allocation5 + $0x10] sm:$0xff]
    %v405 = vld [vmem:[#allocation5 + $0x18] sm:$0xff]
    %v406 = vld [vmem:[#allocation5 + $0x20] sm:$0xff]
    %v407 = vld [vmem:[#allocation5 + $0x28] sm:$0xff]
    %v408 = vld [vmem:[#allocation5 + $0x30] sm:$0xff]
    %v409 = vld [vmem:[#allocation5 + $0x38] sm:$0xff]
    %v410 = vld [vmem:[#allocation5 + $0x40] sm:$0xff]
    %v411 = vld [vmem:[#allocation5 + $0x48] sm:$0xff]
    %v412 = vld [vmem:[#allocation5 + $0x50] sm:$0xff]
    %v413 = vld [vmem:[#allocation5 + $0x58] sm:$0xff]
    %v414 = vld [vmem:[#allocation5 + $0x60] sm:$0xff]
    %v415 = vld [vmem:[#allocation5 + $0x68] sm:$0xff]
    %v416 = vld [vmem:[#allocation5 + $0x70] sm:$0xff]
    %v417 = vld [vmem:[#allocation5 + $0x78] sm:$0xff]
    %v418 = vld [vmem:[#allocation5 + $0x80] sm:$0xff]
    %v419 = vld [vmem:[#allocation5 + $0x88] sm:$0xff]
    %v420 = vld [vmem:[#allocation5 + $0x90] sm:$0xff]
    %v421 = vld [vmem:[#allocation5 + $0x98] sm:$0xff]
    %v422 = vld [vmem:[#allocation5 + $0xa0] sm:$0xff]
    %v423 = vld [vmem:[#allocation5 + $0xa8] sm:$0xff]
    %v424 = vld [vmem:[#allocation5 + $0xb0] sm:$0xff]
    %v425 = vld [vmem:[#allocation5 + $0xb8] sm:$0xff]
    %v426 = vld [vmem:[#allocation5 + $0xc0] sm:$0xff]
    %v427 = vld [vmem:[#allocation5 + $0xc8] sm:$0xff]
    %v428 = vld [vmem:[#allocation5 + $0xd0] sm:$0xff]
    %v429 = vld [vmem:[#allocation5 + $0xd8] sm:$0xff]
    %v430 = vld [vmem:[#allocation5 + $0xe0] sm:$0xff]
    %v431 = vld [vmem:[#allocation5 + $0xe8] sm:$0xff]
    %v432 = vld [vmem:[#allocation5 + $0xf0] sm:$0xff]
    %v433 = vld [vmem:[#allocation5 + $0xf8] sm:$0xff]
    %v434 = vld [vmem:[%s6] sm:$0x3]
    %v436 = vlaneseq
    %v437 = vshrl.u32 %v436, 7
    %v438 = vsub.s32 0, %v437
    %v439 = vrot.slane %v434, %v438
    %v440 = vlaneseq
    %v441 = vshrl.u32 %v440, 7
    %v442 = vsub.s32 1, %v441
    %v443 = vrot.slane %v434, %v442
    %v478 = vunpack.c.l.b16 %v402
    %v479 = vunpack.c.h.b16 %v402
    %v480 = vunpack.c.l.b16 %v403
    %v481 = vunpack.c.h.b16 %v403
    %v482 = vunpack.c.l.b16 %v404
    %v483 = vunpack.c.h.b16 %v404
    %v484 = vunpack.c.l.b16 %v405
    %v485 = vunpack.c.h.b16 %v405
    %v486 = vunpack.c.l.b16 %v406
    %v487 = vunpack.c.h.b16 %v406
    %v488 = vunpack.c.l.b16 %v407
    %v489 = vunpack.c.h.b16 %v407
    %v490 = vunpack.c.l.b16 %v408
    %v491 = vunpack.c.h.b16 %v408
    %v492 = vunpack.c.l.b16 %v409
    %v493 = vunpack.c.h.b16 %v409
    %v494 = vunpack.c.l.b16 %v410
    %v495 = vunpack.c.h.b16 %v410
    %v496 = vunpack.c.l.b16 %v411
    %v497 = vunpack.c.h.b16 %v411
    %v498 = vunpack.c.l.b16 %v412
    %v499 = vunpack.c.h.b16 %v412
    %v500 = vunpack.c.l.b16 %v413
    %v501 = vunpack.c.h.b16 %v413
    %v502 = vunpack.c.l.b16 %v414
    %v503 = vunpack.c.h.b16 %v414
    %v504 = vunpack.c.l.b16 %v415
    %v505 = vunpack.c.h.b16 %v415
    %v506 = vunpack.c.l.b16 %v416
    %v507 = vunpack.c.h.b16 %v416
    %v508 = vunpack.c.l.b16 %v417
    %v509 = vunpack.c.h.b16 %v417
    %v510 = vunpack.c.l.b16 %v418
    %v511 = vunpack.c.h.b16 %v418
    %v512 = vunpack.c.l.b16 %v419
    %v513 = vunpack.c.h.b16 %v419
    %v514 = vunpack.c.l.b16 %v420
    %v515 = vunpack.c.h.b16 %v420
    %v516 = vunpack.c.l.b16 %v421
    %v517 = vunpack.c.h.b16 %v421
    %v518 = vunpack.c.l.b16 %v422
    %v519 = vunpack.c.h.b16 %v422
    %v520 = vunpack.c.l.b16 %v423
    %v521 = vunpack.c.h.b16 %v423
    %v522 = vunpack.c.l.b16 %v424
    %v523 = vunpack.c.h.b16 %v424
    %v524 = vunpack.c.l.b16 %v425
    %v525 = vunpack.c.h.b16 %v425
    %v526 = vunpack.c.l.b16 %v426
    %v527 = vunpack.c.h.b16 %v426
    %v528 = vunpack.c.l.b16 %v427
    %v529 = vunpack.c.h.b16 %v427
    %v530 = vunpack.c.l.b16 %v428
    %v531 = vunpack.c.h.b16 %v428
    %v532 = vunpack.c.l.b16 %v429
    %v533 = vunpack.c.h.b16 %v429
    %v534 = vunpack.c.l.b16 %v430
    %v535 = vunpack.c.h.b16 %v430
    %v536 = vunpack.c.l.b16 %v431
    %v537 = vunpack.c.h.b16 %v431
    %v538 = vunpack.c.l.b16 %v432
    %v539 = vunpack.c.h.b16 %v432
    %v540 = vunpack.c.l.b16 %v433
    %v541 = vunpack.c.h.b16 %v433
    %v542 = vpack.c.b16 %v480, %v478
    %v543 = vpack.c.b16 %v481, %v479
    %v544 = vpack.c.b16 %v484, %v482
    %v545 = vpack.c.b16 %v485, %v483
    %v546 = vpack.c.b16 %v488, %v486
    %v547 = vpack.c.b16 %v489, %v487
    %v548 = vpack.c.b16 %v492, %v490
    %v549 = vpack.c.b16 %v493, %v491
    %v550 = vpack.c.b16 %v496, %v494
    %v551 = vpack.c.b16 %v497, %v495
    %v552 = vpack.c.b16 %v500, %v498
    %v553 = vpack.c.b16 %v501, %v499
    %v554 = vpack.c.b16 %v504, %v502
    %v555 = vpack.c.b16 %v505, %v503
    %v556 = vpack.c.b16 %v508, %v506
    %v557 = vpack.c.b16 %v509, %v507
    %v558 = vpack.c.b16 %v512, %v510
    %v559 = vpack.c.b16 %v513, %v511
    %v560 = vpack.c.b16 %v516, %v514
    %v561 = vpack.c.b16 %v517, %v515
    %v562 = vpack.c.b16 %v520, %v518
    %v563 = vpack.c.b16 %v521, %v519
    %v564 = vpack.c.b16 %v524, %v522
    %v565 = vpack.c.b16 %v525, %v523
    %v566 = vpack.c.b16 %v528, %v526
    %v567 = vpack.c.b16 %v529, %v527
    %v568 = vpack.c.b16 %v532, %v530
    %v569 = vpack.c.b16 %v533, %v531
    %v570 = vpack.c.b16 %v536, %v534
    %v571 = vpack.c.b16 %v537, %v535
    %v572 = vpack.c.b16 %v540, %v538
    %v573 = vpack.c.b16 %v541, %v539
    %606 = vmatprep.subr.bf16.mxu0 %v543
    %607 = vmatpush1.bf16.msra.mxu0 %v542
    %608 = vmatprep.subr.bf16.mxu0 %v545
    %609 = vmatpush1.bf16.msra.mxu0 %v544
    %610 = vmatprep.subr.bf16.mxu0 %v547
    %611 = vmatpush1.bf16.msra.mxu0 %v546
    %612 = vmatprep.subr.bf16.mxu0 %v549
    %613 = vmatpush1.bf16.msra.mxu0 %v548
    %614 = vmatprep.subr.bf16.mxu0 %v551
    %615 = vmatpush1.bf16.msra.mxu0 %v550
    %616 = vmatprep.subr.bf16.mxu0 %v553
    %617 = vmatpush1.bf16.msra.mxu0 %v552
    %618 = vmatprep.subr.bf16.mxu0 %v555
    %619 = vmatpush1.bf16.msra.mxu0 %v554
    %620 = vmatprep.subr.bf16.mxu0 %v557
    %621 = vmatpush1.bf16.msra.mxu0 %v556
    %622 = vmatprep.subr.bf16.mxu0 %v559
    %623 = vmatpush1.bf16.msra.mxu0 %v558
    %624 = vmatprep.subr.bf16.mxu0 %v561
    %625 = vmatpush1.bf16.msra.mxu0 %v560
    %626 = vmatprep.subr.bf16.mxu0 %v563
    %627 = vmatpush1.bf16.msra.mxu0 %v562
    %628 = vmatprep.subr.bf16.mxu0 %v565
    %629 = vmatpush1.bf16.msra.mxu0 %v564
    %630 = vmatprep.subr.bf16.mxu0 %v567
    %631 = vmatpush1.bf16.msra.mxu0 %v566
    %632 = vmatprep.subr.bf16.mxu0 %v569
    %633 = vmatpush1.bf16.msra.mxu0 %v568
    %634 = vmatprep.subr.bf16.mxu0 %v571
    %635 = vmatpush1.bf16.msra.mxu0 %v570
    %636 = vmatprep.subr.bf16.mxu0 %v573
    %637 = vmatpush1.bf16.msra.mxu0 %v572
    %638 = vmatprep.mubr.bf16.mxu0 %v401
    %639 = vmatmul.mubr.bf16.gmra.mrb[0].mxu0 %v400
    %v640 = vpop.f32.mrb[0].mxu0
    %v641 = vadd.f32 %v439, %v640
    %v642 = vpop.f32.mrb[0].mxu0
    %v643 = vadd.f32 %v443, %v642
    %v644 = vpop.f32.mrb[0].mxu0
    %v645 = vpop.f32.mrb[0].mxu0
    %646 = vdwg.mxu0
    %v647 = vmul.f32 %v641, 0.01
    %v648 = vmul.f32 %v643, 0.01
    %v649 = vmax.f32 %v641, %v647
    %v650 = vmax.f32 %v643, %v648
    %v651 = vpack.c.bf16 %v649, %v649
    %v652 = vpack.c.bf16 %v650, %v650
    %v653 = vld [vmem:[%s7] sm:$0xf]
    %v654 = vld [vmem:[%s7 + $0x4] sm:$0xf]
    %v655 = vld [vmem:[%s7 + $0x8] sm:$0xf]
    %v656 = vld [vmem:[%s7 + $0xc] sm:$0xf]
    %v657 = vld [vmem:[%s7 + $0x10] sm:$0xf]
    %v658 = vld [vmem:[%s7 + $0x14] sm:$0xf]
    %v659 = vld [vmem:[%s7 + $0x18] sm:$0xf]
    %v660 = vld [vmem:[%s7 + $0x1c] sm:$0xf]
    %v661 = vld [vmem:[%s7 + $0x20] sm:$0xf]
    %v662 = vld [vmem:[%s7 + $0x24] sm:$0xf]
    %v663 = vld [vmem:[%s7 + $0x28] sm:$0xf]
    %v664 = vld [vmem:[%s7 + $0x2c] sm:$0xf]
    %v665 = vld [vmem:[%s7 + $0x30] sm:$0xf]
    %v666 = vld [vmem:[%s7 + $0x34] sm:$0xf]
    %v667 = vld [vmem:[%s7 + $0x38] sm:$0xf]
    %v668 = vld [vmem:[%s7 + $0x3c] sm:$0xf]
    %v669 = vld [vmem:[%s7 + $0x40] sm:$0xf]
    %v670 = vld [vmem:[%s7 + $0x44] sm:$0xf]
    %v671 = vld [vmem:[%s7 + $0x48] sm:$0xf]
    %v672 = vld [vmem:[%s7 + $0x4c] sm:$0xf]
    %v673 = vld [vmem:[%s7 + $0x50] sm:$0xf]
    %v674 = vld [vmem:[%s7 + $0x54] sm:$0xf]
    %v675 = vld [vmem:[%s7 + $0x58] sm:$0xf]
    %v676 = vld [vmem:[%s7 + $0x5c] sm:$0xf]
    %v677 = vld [vmem:[%s7 + $0x60] sm:$0xf]
    %v678 = vld [vmem:[%s7 + $0x64] sm:$0xf]
    %v679 = vld [vmem:[%s7 + $0x68] sm:$0xf]
    %v680 = vld [vmem:[%s7 + $0x6c] sm:$0xf]
    %v681 = vld [vmem:[%s7 + $0x70] sm:$0xf]
    %v682 = vld [vmem:[%s7 + $0x74] sm:$0xf]
    %v683 = vld [vmem:[%s7 + $0x78] sm:$0xf]
    %v684 = vld [vmem:[%s7 + $0x7c] sm:$0xf]
    %v685 = vld [vmem:[%s8] sm:$0x1]
    %v687 = vlaneseq
    %v688 = vshrl.u32 %v687, 7
    %v689 = vsub.s32 0, %v688
    %v690 = vrot.slane %v685, %v689
    %v724 = vunpack.c.l.b16 %v653
    %v725 = vunpack.c.l.b16 %v654
    %v726 = vunpack.c.l.b16 %v655
    %v727 = vunpack.c.l.b16 %v656
    %v728 = vunpack.c.l.b16 %v657
    %v729 = vunpack.c.l.b16 %v658
    %v730 = vunpack.c.l.b16 %v659
    %v731 = vunpack.c.l.b16 %v660
    %v732 = vunpack.c.l.b16 %v661
    %v733 = vunpack.c.l.b16 %v662
    %v734 = vunpack.c.l.b16 %v663
    %v735 = vunpack.c.l.b16 %v664
    %v736 = vunpack.c.l.b16 %v665
    %v737 = vunpack.c.l.b16 %v666
    %v738 = vunpack.c.l.b16 %v667
    %v739 = vunpack.c.l.b16 %v668
    %v740 = vunpack.c.l.b16 %v669
    %v741 = vunpack.c.l.b16 %v670
    %v742 = vunpack.c.l.b16 %v671
    %v743 = vunpack.c.l.b16 %v672
    %v744 = vunpack.c.l.b16 %v673
    %v745 = vunpack.c.l.b16 %v674
    %v746 = vunpack.c.l.b16 %v675
    %v747 = vunpack.c.l.b16 %v676
    %v748 = vunpack.c.l.b16 %v677
    %v749 = vunpack.c.l.b16 %v678
    %v750 = vunpack.c.l.b16 %v679
    %v751 = vunpack.c.l.b16 %v680
    %v752 = vunpack.c.l.b16 %v681
    %v753 = vunpack.c.l.b16 %v682
    %v754 = vunpack.c.l.b16 %v683
    %v755 = vunpack.c.l.b16 %v684
    %v756 = vpack.c.b16 %v725, %v724
    %v757 = vpack.c.b16 %v727, %v726
    %v758 = vpack.c.b16 %v729, %v728
    %v759 = vpack.c.b16 %v731, %v730
    %v760 = vpack.c.b16 %v733, %v732
    %v761 = vpack.c.b16 %v735, %v734
    %v762 = vpack.c.b16 %v737, %v736
    %v763 = vpack.c.b16 %v739, %v738
    %v764 = vpack.c.b16 %v741, %v740
    %v765 = vpack.c.b16 %v743, %v742
    %v766 = vpack.c.b16 %v745, %v744
    %v767 = vpack.c.b16 %v747, %v746
    %v768 = vpack.c.b16 %v749, %v748
    %v769 = vpack.c.b16 %v751, %v750
    %v770 = vpack.c.b16 %v753, %v752
    %v771 = vpack.c.b16 %v755, %v754
    %788 = vmatprep.subr.bf16.mxu0 0
    %789 = vmatpush1.bf16.msra.mxu0 %v756
    %790 = vmatprep.subr.bf16.mxu0 0
    %791 = vmatpush1.bf16.msra.mxu0 %v757
    %792 = vmatprep.subr.bf16.mxu0 0
    %793 = vmatpush1.bf16.msra.mxu0 %v758
    %794 = vmatprep.subr.bf16.mxu0 0
    %795 = vmatpush1.bf16.msra.mxu0 %v759
    %796 = vmatprep.subr.bf16.mxu0 0
    %797 = vmatpush1.bf16.msra.mxu0 %v760
    %798 = vmatprep.subr.bf16.mxu0 0
    %799 = vmatpush1.bf16.msra.mxu0 %v761
    %800 = vmatprep.subr.bf16.mxu0 0
    %801 = vmatpush1.bf16.msra.mxu0 %v762
    %802 = vmatprep.subr.bf16.mxu0 0
    %803 = vmatpush1.bf16.msra.mxu0 %v763
    %804 = vmatprep.subr.bf16.mxu0 0
    %805 = vmatpush1.bf16.msra.mxu0 %v764
    %806 = vmatprep.subr.bf16.mxu0 0
    %807 = vmatpush1.bf16.msra.mxu0 %v765
    %808 = vmatprep.subr.bf16.mxu0 0
    %809 = vmatpush1.bf16.msra.mxu0 %v766
    %810 = vmatprep.subr.bf16.mxu0 0
    %811 = vmatpush1.bf16.msra.mxu0 %v767
    %812 = vmatprep.subr.bf16.mxu0 0
    %813 = vmatpush1.bf16.msra.mxu0 %v768
    %814 = vmatprep.subr.bf16.mxu0 0
    %815 = vmatpush1.bf16.msra.mxu0 %v769
    %816 = vmatprep.subr.bf16.mxu0 0
    %817 = vmatpush1.bf16.msra.mxu0 %v770
    %818 = vmatprep.subr.bf16.mxu0 0
    %819 = vmatpush1.bf16.msra.mxu0 %v771
    %820 = vmatprep.mubr.bf16.mxu0 %v652
    %821 = vmatmul.mubr.bf16.gmra.mrb[0].mxu0 %v651
    %v822 = vpop.f32.mrb[0].mxu0
    %v823 = vadd.f32 %v690, %v822
    %v824 = vpop.f32.mrb[0].mxu0
    %v825 = vpop.f32.mrb[0].mxu0
    %v826 = vpop.f32.mrb[0].mxu0
    %827 = vdwg.mxu0
    %vm828 = vcmask 130048
    %829 = vst.msk [vmem:[#allocation7] sm:$0xff] %vm828, %v823
    // Predicated region
    $region46: #{plainnet_forward.1} parent=1 // pred_check
      _
    $region47: #{plainnet_forward.1} parent=1 // pred_check_branch
      %831 = sbr.rel (0) target = $region49
    $region48: #{plainnet_forward.1} parent=1 // pred_region
      %s833 = ssub.s32 128, 128
      %834 = vsyncadd [#allocation4], %s833
      %s836 = sshll.u32 [#allocation7], 4
      %s837 = int_to_ptr.vmem [resolvable:$true] %s836
      %839 = dma.vmem_to_hbm [thread:$0]  %s837, 128, %s9, [#allocation4]
    $region49: #{plainnet_forward.1} parent=1 // pred_fallthru
      _
    // Predicated region
    $region50: #{plainnet_forward.1} parent=1 // pred_check
      _
    $region51: #{plainnet_forward.1} parent=1 // pred_check_branch
      %841 = sbr.rel (0) target = $region53
    $region52: #{plainnet_forward.1} parent=1 // pred_region
      %842 = dma.done [#allocation4], 128
    $region53: #{plainnet_forward.1} parent=1 // pred_fallthru
      _
    %843 = vsyncpa [#allocation3], 1
    %844 = vsyncpa [#allocation6], 1
    %845 = vsyncpa [#allocation4], 1

</llo_original>
